<compile_context>
chip_gen: v6e
topology: v6e:2x2x1
jax: 0.10.0
libtpu: 0.0.40
codegen_flags: <defaults>
</compile_context>

<pallas_src>
import functools

import jax
import jax.numpy as jnp
from jax import lax
from jax.experimental import pallas as pl
from jax.experimental.pallas import tpu as pltpu


_LANE = 128
_MAX_TM = 256     # max rows per tile (multiple of the packed sublane unit)
_MAX_TL = 2048    # max L elements per tile (multiple of 128)
# f32 worst case: 2 inputs * 2 pipeline buffers * 256*2048*4B = 8 MiB of input
# buffers + 2 * 128 KiB output buffers -> comfortably under the 16/32 MiB
# scoped defaults on every generation and well under v7x's 64 MiB physical.


def _round_up(x, m):
    return ((x + m - 1) // m) * m


def _cdiv(a, b):
    return -(-a // b)


def _sublane_unit(dtype):
    """Row-tile granularity that matches the packed sublane layout."""
    bits = jnp.dtype(dtype).itemsize * 8
    return 8 * max(1, 32 // max(bits, 1))   # f32 -> 8, bf16 -> 16, int8 -> 32


def _bce_focal_kernel(x_ref, t_ref, out_ref, *,
                      gamma, gamma_is_int, n_lane_groups,
                      rows, cols, tm, tl, mask_rows, mask_cols):
    li = pl.program_id(1)           # position along the (reduction) L axis

    @pl.when(li == 0)
    def _():
        out_ref[...] = jnp.zeros_like(out_ref)

    one = jnp.float32(1.0)
    eps = jnp.float32(1e-14)

    # Hoisted edge masks (only materialized when the shape is ragged).
    if mask_rows:
        rows_left = rows - pl.program_id(0) * tm                 # scalar
        row_valid = lax.broadcasted_iota(jnp.int32, (tm, _LANE), 0) < rows_left
    if mask_cols:
        lane_ids = lax.broadcasted_iota(jnp.int32, (tm, _LANE), 1)
        tile_col0 = li * tl                                      # scalar

    # Lane-wise partial sums, one 128-wide group at a time: no full (TM, TL)
    # f32 intermediates; pure VALU/EUP work with a single cross-lane reduce
    # deferred to the wrapper.
    partial = jnp.zeros((tm, _LANE), jnp.float32)
    for g in range(n_lane_groups):
        lo = g * _LANE
        x = x_ref[:, lo:lo + _LANE].astype(jnp.float32)
        t = t_ref[:, lo:lo + _LANE].astype(jnp.float32)

        one_minus_x = one - x
        log_x = jnp.log(x + eps)
        log_1mx = jnp.log(one_minus_x + eps)

        if gamma_is_int:
            # Python int -> integer_pow (repeated VPU multiplies, no EUP).
            pow_1mx = one_minus_x ** gamma
            pow_x = x ** gamma
        else:
            # Fractional gamma: reuse the logs already computed above
            # (eps-level deviation from the exact pow, negligible).
            pow_1mx = jnp.exp(gamma * log_1mx)
            pow_x = jnp.exp(gamma * log_x)

        a = pow_1mx * log_x               # coefficient of t
        b = pow_x * log_1mx               # coefficient of (1 - t)
        loss = b + t * (a - b)            # == t*a + (1-t)*b, one mul fewer

        if mask_rows or mask_cols:
            if mask_cols:
                col_valid = lane_ids < (cols - (tile_col0 + lo))
                valid = (row_valid & col_valid) if mask_rows else col_valid
            else:
                valid = row_valid
            # Select (not multiply): OOB garbage / NaN cannot poison the sum.
            loss = jnp.where(valid, loss, jnp.float32(0.0))

        partial = partial + loss

    out_ref[...] += partial


def bce_focal_loss(inputs, targets, gamma=2):
    """Pallas implementation of BCE_focal_loss.forward.

    inputs, targets: (B, C, H, W) arrays (probabilities / labels), any float
    or integer dtype (streamed in native dtype, math done in float32).
    Returns: (B, C) float32, matching torch's sum over dims -1 and -2.
    """
    assert inputs.shape == targets.shape
    B, C, H, W = inputs.shape
    R, L = B * C, H * W

    gamma_is_int = float(gamma) == int(gamma)
    gamma = int(gamma) if gamma_is_int else float(gamma)

    x = inputs.reshape(R, L)        # keep native dtype (no f32 upcast in HBM)
    t = targets.reshape(R, L)

    unit_m = max(_sublane_unit(x.dtype), _sublane_unit(t.dtype))

    # Tiles fixed at their maxima (capped to the problem size); cdiv grid with
    # in-kernel edge masking instead of divisor hunting or wrapper padding.
    TL = min(_MAX_TL, _round_up(L, _LANE))
    TM = min(_MAX_TM, _round_up(R, unit_m))
    n_row_blocks = _cdiv(R, TM)
    if n_row_blocks < 2 and R > unit_m:
        # Ensure >= 2 blocks on the "parallel" row axis so both v7x
        # TensorCores get work. (When R <= unit_m a single block is forced;
        # a parallel split of L would be needed to use the 2nd core there.)
        TM = _round_up(_cdiv(R, 2), unit_m)
        n_row_blocks = _cdiv(R, TM)
    n_l_blocks = _cdiv(L, TL)

    mask_rows = (n_row_blocks * TM) != R
    mask_cols = (n_l_blocks * TL) != L

    R_out = n_row_blocks * TM

    kern = functools.partial(
        _bce_focal_kernel,
        gamma=gamma, gamma_is_int=gamma_is_int, n_lane_groups=TL // _LANE,
        rows=R, cols=L, tm=TM, tl=TL,
        mask_rows=mask_rows, mask_cols=mask_cols)

    # Output = lane-dense (R_out, 128) per-row partial sums; the output block
    # itself is the resident accumulator across the "arbitrary" L axis.
    lane_sums = pl.pallas_call(
        kern,
        out_shape=jax.ShapeDtypeStruct((R_out, _LANE), jnp.float32),
        grid=(n_row_blocks, n_l_blocks),
        in_specs=[
            pl.BlockSpec((TM, TL), lambda i, j: (i, j)),
            pl.BlockSpec((TM, TL), lambda i, j: (i, j)),
        ],
        out_specs=pl.BlockSpec((TM, _LANE), lambda i, j: (i, 0)),
        compiler_params=pltpu.CompilerParams(
            dimension_semantics=("parallel", "arbitrary"),
            vmem_limit_bytes=32 * 1024 * 1024),
    )(x, t)

    # Tiny final cross-lane reduce + negate in XLA (output HBM traffic is only
    # R_out * 512 B, negligible vs. the input traffic).
    return (-jnp.sum(lane_sums[:R], axis=-1)).reshape(B, C)


def _reference(inputs, targets, gamma=2):
    x = inputs.astype(jnp.float32)
    t = targets.astype(jnp.float32)
    loss = ((1.0 - x) ** gamma) * t * jnp.log(x + 1e-14) \
         + (x ** gamma) * (1.0 - t) * jnp.log(1.0 - x + 1e-14)
    return -jnp.sum(jnp.sum(loss, axis=-1), axis=-1)


if __name__ == "__main__":
    key = jax.random.PRNGKey(0)
    k1, k2, k3, k4, k5, k6 = jax.random.split(key, 6)

    # Case 1: tile-aligned shape, integer gamma.
    B, C, H, W = 2, 4, 16, 16
    inputs = jax.nn.sigmoid(jax.random.normal(k1, (B, C, H, W), dtype=jnp.float32))
    targets = (jax.random.uniform(k2, (B, C, H, W)) > 0.5).astype(jnp.float32)
    out = jax.block_until_ready(bce_focal_loss(inputs, targets, gamma=2))
    ref = _reference(inputs, targets, gamma=2)
    assert out.shape == (B, C)
    assert jnp.allclose(out, ref, rtol=1e-4, atol=1e-3), (out, ref)

    # Case 2: shape NOT on the (8, 128) grid -> exercises in-kernel masking.
    B2, C2, H2, W2 = 2, 3, 10, 13
    inputs2 = jax.nn.sigmoid(jax.random.normal(k3, (B2, C2, H2, W2), dtype=jnp.float32))
    targets2 = (jax.random.uniform(k4, (B2, C2, H2, W2)) > 0.5).astype(jnp.float32)
    out2 = jax.block_until_ready(bce_focal_loss(inputs2, targets2, gamma=2))
    ref2 = _reference(inputs2, targets2, gamma=2)
    assert out2.shape == (B2, C2)
    assert jnp.allclose(out2, ref2, rtol=1e-4, atol=1e-3), (out2, ref2)

    # Case 3: ragged shape with >= 2 row blocks and fractional gamma.
    B3, C3, H3, W3 = 3, 7, 20, 37
    inputs3 = jax.nn.sigmoid(jax.random.normal(k5, (B3, C3, H3, W3), dtype=jnp.float32))
    targets3 = (jax.random.uniform(k6, (B3, C3, H3, W3)) > 0.5).astype(jnp.float32)
    out3 = jax.block_until_ready(bce_focal_loss(inputs3, targets3, gamma=1.5))
    ref3 = _reference(inputs3, targets3, gamma=1.5)
    assert out3.shape == (B3, C3)
    assert jnp.allclose(out3, ref3, rtol=2e-4, atol=1e-3), (out3, ref3)

    print("KERNEL_OK")
</pallas_src>

<mosaic_0001>
module attributes {stable_mosaic.version = 11 : i64} {
  func.func @_bce_focal_kernel(%arg0: i32, %arg1: i32, %arg2: memref<8x256xf32, #tpu.memory_space<vmem>>, %arg3: memref<8x256xf32, #tpu.memory_space<vmem>>, %arg4: memref<8x128xf32, #tpu.memory_space<vmem>>) attributes {dimension_semantics = [#tpu.dimension_semantics<parallel>, #tpu.dimension_semantics<arbitrary>], iteration_bounds = array<i64: 1, 1>, scalar_prefetch = 0 : i64, scratch_operands = 0 : i64, tpu.core_type = #tpu.core_type<tc>, window_params = [{transform_indices = @transform_0, window_bounds = array<i64: 8, 256>}, {transform_indices = @transform_1, window_bounds = array<i64: 8, 256>}, {transform_indices = @transform_2, window_bounds = array<i64: 8, 128>}]} {
    %c0_i32 = arith.constant 0 : i32
    %0 = arith.cmpi eq, %arg1, %c0_i32 : i32
    %1 = arith.extui %0 : i1 to i32
    %c0_i32_0 = arith.constant 0 : i32
    %2 = arith.cmpi ne, %1, %c0_i32_0 : i32
    scf.if %2 {
      %cst_17 = arith.constant 0.000000e+00 : f32
      %43 = vector.broadcast %cst_17 : f32 to vector<8x128xf32>
      %c0_18 = arith.constant 0 : index
      %c0_19 = arith.constant 0 : index
      %44 = vector.load %arg4[%c0_18, %c0_19] : memref<8x128xf32, #tpu.memory_space<vmem>>, vector<8x128xf32>
      tpu.vector_store %arg4[%c0_18, %c0_19], %43 {strides = array<i32>} : memref<8x128xf32, #tpu.memory_space<vmem>>, vector<8x128xf32>,
    } else {
    }
    %cst = arith.constant 0.000000e+00 : f32
    %3 = vector.broadcast %cst : f32 to vector<8x128xf32>
    %c0 = arith.constant 0 : index
    %c0_1 = arith.constant 0 : index
    %4 = vector.load %arg2[%c0, %c0_1] : memref<8x256xf32, #tpu.memory_space<vmem>>, vector<8x128xf32>
    %c0_2 = arith.constant 0 : index
    %c0_3 = arith.constant 0 : index
    %5 = vector.load %arg3[%c0_2, %c0_3] : memref<8x256xf32, #tpu.memory_space<vmem>>, vector<8x128xf32>
    %cst_4 = arith.constant 1.000000e+00 : f32
    %6 = vector.broadcast %cst_4 : f32 to vector<8x128xf32>
    %7 = arith.subf %6, %4 : vector<8x128xf32>
    %cst_5 = arith.constant 9.99999982E-15 : f32
    %8 = vector.broadcast %cst_5 : f32 to vector<8x128xf32>
    %9 = arith.addf %4, %8 : vector<8x128xf32>
    %10 = math.log %9 : vector<8x128xf32>
    %cst_6 = arith.constant 9.99999982E-15 : f32
    %11 = vector.broadcast %cst_6 : f32 to vector<8x128xf32>
    %12 = arith.addf %7, %11 : vector<8x128xf32>
    %13 = math.log %12 : vector<8x128xf32>
    %14 = arith.mulf %7, %7 : vector<8x128xf32>
    %15 = arith.mulf %4, %4 : vector<8x128xf32>
    %16 = arith.mulf %14, %10 : vector<8x128xf32>
    %17 = arith.mulf %15, %13 : vector<8x128xf32>
    %18 = arith.subf %16, %17 : vector<8x128xf32>
    %19 = arith.mulf %5, %18 : vector<8x128xf32>
    %20 = arith.addf %17, %19 : vector<8x128xf32>
    %21 = arith.addf %3, %20 : vector<8x128xf32>
    %c0_7 = arith.constant 0 : index
    %c128 = arith.constant 128 : index
    %22 = vector.load %arg2[%c0_7, %c128] : memref<8x256xf32, #tpu.memory_space<vmem>>, vector<8x128xf32>
    %c0_8 = arith.constant 0 : index
    %c128_9 = arith.constant 128 : index
    %23 = vector.load %arg3[%c0_8, %c128_9] : memref<8x256xf32, #tpu.memory_space<vmem>>, vector<8x128xf32>
    %cst_10 = arith.constant 1.000000e+00 : f32
    %24 = vector.broadcast %cst_10 : f32 to vector<8x128xf32>
    %25 = arith.subf %24, %22 : vector<8x128xf32>
    %cst_11 = arith.constant 9.99999982E-15 : f32
    %26 = vector.broadcast %cst_11 : f32 to vector<8x128xf32>
    %27 = arith.addf %22, %26 : vector<8x128xf32>
    %28 = math.log %27 : vector<8x128xf32>
    %cst_12 = arith.constant 9.99999982E-15 : f32
    %29 = vector.broadcast %cst_12 : f32 to vector<8x128xf32>
    %30 = arith.addf %25, %29 : vector<8x128xf32>
    %31 = math.log %30 : vector<8x128xf32>
    %32 = arith.mulf %25, %25 : vector<8x128xf32>
    %33 = arith.mulf %22, %22 : vector<8x128xf32>
    %34 = arith.mulf %32, %28 : vector<8x128xf32>
    %35 = arith.mulf %33, %31 : vector<8x128xf32>
    %36 = arith.subf %34, %35 : vector<8x128xf32>
    %37 = arith.mulf %23, %36 : vector<8x128xf32>
    %38 = arith.addf %35, %37 : vector<8x128xf32>
    %39 = arith.addf %21, %38 : vector<8x128xf32>
    %c0_13 = arith.constant 0 : index
    %c0_14 = arith.constant 0 : index
    %40 = vector.load %arg4[%c0_13, %c0_14] : memref<8x128xf32, #tpu.memory_space<vmem>>, vector<8x128xf32>
    %41 = arith.addf %40, %39 : vector<8x128xf32>
    %c0_15 = arith.constant 0 : index
    %c0_16 = arith.constant 0 : index
    %42 = vector.load %arg4[%c0_15, %c0_16] : memref<8x128xf32, #tpu.memory_space<vmem>>, vector<8x128xf32>
    tpu.vector_store %arg4[%c0_15, %c0_16], %41 {strides = array<i32>} : memref<8x128xf32, #tpu.memory_space<vmem>>, vector<8x128xf32>,
    return
  }
  func.func @transform_0(%arg0: i32, %arg1: i32) -> (i32, i32) {
    %c0_i32 = arith.constant 0 : i32
    return %arg0, %arg1 : i32, i32
  }
  func.func @transform_1(%arg0: i32, %arg1: i32) -> (i32, i32) {
    %c0_i32 = arith.constant 0 : i32
    return %arg0, %arg1 : i32, i32
  }
  func.func @transform_2(%arg0: i32, %arg1: i32) -> (i32, i32) {
    %c0_i32 = arith.constant 0 : i32
    %c0_i32_0 = arith.constant 0 : i32
    return %arg0, %c0_i32 : i32, i32
  }
}

</mosaic_0001>

<llo_original>
// kernel: tpu_custom_call.1
$region0: #{tpu_custom_call.1}
  #allocation0 [shape = 'u32[]', space=smem, size = 0x4, offset = 0x4, fixed_abs, tag = 'smem constant byte address 0x4 - core index']
  #allocation1 [shape = 'u32[144,128]{1,0:T(1,128)}', space=vmem, size = 0x12000, scoped, tag = 'internal scratch']
  %s0 = inlined_call_operand.hbm [shape: f32[8,256], index: 0, kind: input, shape index: {}]
  %s1 = inlined_call_operand.hbm [shape: f32[8,256], index: 1, kind: input, shape index: {}]
  %s2 = inlined_call_operand.hbm [shape: f32[8,128], index: 2, kind: output, shape index: {}]
  %s3 = sld [smem:[#allocation0]]
  $region30: #{tpu_custom_call.1} parent=0
    _
  %s5 = ssub.s32 1, %s3
  %s6 = scalar_select 0, %s5, %s3
  $region1: #{tpu_custom_call.1} parent=0
    #allocation2 [shape = 'u8[8192]{0}', space=vmem, size = 0x2000, scoped, tag = 'input window, operand 0, single buffered']
    #allocation3 [shape = 's32[1]{0}', space=sflag, size = 0x4, scoped, tag = 'scoped memory for tpu_custom_call.1']
    #allocation4 [shape = 's32[1]{0}', space=sflag, size = 0x4, scoped, tag = 'scoped memory for tpu_custom_call.1']
    #allocation5 [shape = 'u8[8192]{0}', space=vmem, size = 0x2000, scoped, tag = 'input window, operand 1, single buffered']
    #allocation6 [shape = 's32[1]{0}', space=sflag, size = 0x4, scoped, tag = 'scoped memory for tpu_custom_call.1']
    #allocation7 [shape = 'u8[4096]{0}', space=vmem, size = 0x1000, scoped, tag = 'output window, operand 0, single buffered']
    %7 = vsyncpa [#allocation3], 0
    %8 = vsyncpa [#allocation6], 0
    %9 = vsyncpa [#allocation4], 0
    // Predicated region
    $region2: #{tpu_custom_call.1} parent=1 // pred_check
      _
    $region3: #{tpu_custom_call.1} parent=1 // pred_check_branch
      %11 = sbr.rel (0) target = $region5
    $region4: #{tpu_custom_call.1} parent=1 // pred_region
      %s13 = ssub.s32 256, 256
      %14 = vsyncadd [#allocation3], %s13
      %s16 = sshll.u32 [#allocation2], 4
      %s17 = int_to_ptr.vmem [resolvable:$true] %s16
      %19 = dma.hbm_to_vmem [thread:$0]  %s0, 256, %s17, [#allocation3]
    $region5: #{tpu_custom_call.1} parent=1 // pred_fallthru
      _
    // Predicated region
    $region6: #{tpu_custom_call.1} parent=1 // pred_check
      _
    $region7: #{tpu_custom_call.1} parent=1 // pred_check_branch
      %21 = sbr.rel (0) target = $region9
    $region8: #{tpu_custom_call.1} parent=1 // pred_region
      %s23 = ssub.s32 256, 256
      %24 = vsyncadd [#allocation6], %s23
      %s26 = sshll.u32 [#allocation5], 4
      %s27 = int_to_ptr.vmem [resolvable:$true] %s26
      %29 = dma.hbm_to_vmem [thread:$0]  %s1, 256, %s27, [#allocation6]
    $region9: #{tpu_custom_call.1} parent=1 // pred_fallthru
      _
    // Predicated region
    $region10: #{tpu_custom_call.1} parent=1 // pred_check
      _
    $region11: #{tpu_custom_call.1} parent=1 // pred_check_branch
      %31 = sbr.rel (0) target = $region13
    $region12: #{tpu_custom_call.1} parent=1 // pred_region
      %32 = dma.done [#allocation3], 256
    $region13: #{tpu_custom_call.1} parent=1 // pred_fallthru
      _
    // Predicated region
    $region14: #{tpu_custom_call.1} parent=1 // pred_check
      _
    $region15: #{tpu_custom_call.1} parent=1 // pred_check_branch
      %34 = sbr.rel (0) target = $region17
    $region16: #{tpu_custom_call.1} parent=1 // pred_region
      %35 = dma.done [#allocation6], 256
    $region17: #{tpu_custom_call.1} parent=1 // pred_fallthru
      _
    %p36 = scmp.eq.s32.totalorder 0, 0
    // Predicated region
    $region18: #{tpu_custom_call.1} parent=1 // pred_check
      %p37 = pneg %p36
    $region19: #{tpu_custom_call.1} parent=1 // pred_check_branch
      %39 = sbr.rel (%p37) target = $region21
    $region20: #{tpu_custom_call.1} parent=1 // pred_region
      %40 = vst [vmem:[#allocation7] sm:$0xff] 0.0
    $region21: #{tpu_custom_call.1} parent=1 // pred_fallthru
      _
    %v41 = vld [vmem:[#allocation2] sm:$0xff]
    %v42 = vld [vmem:[#allocation5] sm:$0xff]
    %v43 = vsub.f32 1.0, %v41
    %v44 = vadd.f32 %v41, 1e-14
    %v45 = vlog2.pop %v44
    %v46 = vmul.f32 %v45, 0.6931472
    %v47 = vadd.f32 %v43, 1e-14
    %v48 = vlog2.pop %v47
    %v49 = vmul.f32 %v48, 0.6931472
    %v50 = vmul.f32 %v43, %v43
    %v51 = vmul.f32 %v41, %v41
    %v52 = vmul.f32 %v50, %v46
    %v53 = vmul.f32 %v51, %v49
    %v54 = vsub.f32 %v52, %v53
    %v55 = vmul.f32 %v42, %v54
    %v56 = vadd.f32 %v53, %v55
    %v57 = vadd.f32 %v56, 0.0
    %v58 = vld [vmem:[#allocation2 + $0x8] sm:$0xff]
    %v59 = vld [vmem:[#allocation5 + $0x8] sm:$0xff]
    %v60 = vsub.f32 1.0, %v58
    %v61 = vadd.f32 %v58, 1e-14
    %v62 = vlog2.pop %v61
    %v63 = vmul.f32 %v62, 0.6931472
    %v64 = vadd.f32 %v60, 1e-14
    %v65 = vlog2.pop %v64
    %v66 = vmul.f32 %v65, 0.6931472
    %v67 = vmul.f32 %v60, %v60
    %v68 = vmul.f32 %v58, %v58
    %v69 = vmul.f32 %v67, %v63
    %v70 = vmul.f32 %v68, %v66
    %v71 = vsub.f32 %v69, %v70
    %v72 = vmul.f32 %v59, %v71
    %v73 = vadd.f32 %v70, %v72
    %v74 = vadd.f32 %v57, %v73
    %v75 = vld [vmem:[#allocation7] sm:$0xff]
    %v76 = vadd.f32 %v75, %v74
    %77 = vst [vmem:[#allocation7] sm:$0xff] %v76
    // Predicated region
    $region22: #{tpu_custom_call.1} parent=1 // pred_check
      _
    $region23: #{tpu_custom_call.1} parent=1 // pred_check_branch
      %79 = sbr.rel (0) target = $region25
    $region24: #{tpu_custom_call.1} parent=1 // pred_region
      %s81 = ssub.s32 128, 128
      %82 = vsyncadd [#allocation4], %s81
      %s84 = sshll.u32 [#allocation7], 4
      %s85 = int_to_ptr.vmem [resolvable:$true] %s84
      %87 = dma.vmem_to_hbm [thread:$0]  %s85, 128, %s2, [#allocation4]
    $region25: #{tpu_custom_call.1} parent=1 // pred_fallthru
      _
    // Predicated region
    $region26: #{tpu_custom_call.1} parent=1 // pred_check
      _
    $region27: #{tpu_custom_call.1} parent=1 // pred_check_branch
      %89 = sbr.rel (0) target = $region29
    $region28: #{tpu_custom_call.1} parent=1 // pred_region
      %90 = dma.done [#allocation4], 128
    $region29: #{tpu_custom_call.1} parent=1 // pred_fallthru
      _
    %91 = vsyncpa [#allocation3], 1
    %92 = vsyncpa [#allocation6], 1
    %93 = vsyncpa [#allocation4], 1

</llo_original>
